<compile_context>
chip_gen: v7x
topology: tpu7x:2x2x1
jax: 0.10.0
libtpu: 0.0.40
codegen_flags: <defaults>
</compile_context>

<pallas_src>
import jax
import jax.numpy as jnp
from jax.experimental import pallas as pl
from jax.experimental.pallas import tpu as pltpu


def _text_graph_kernel(x_ref, ah_ref, w1t_ref, wgt_ref, nscale_ref, nshift_ref,
                       bg_ref, alpha_ref, out_ref):
    Bt, L, Dp = x_ref.shape
    a1 = alpha_ref[0]            # PReLU slope of the node MLP (SMEM scalar)
    a2 = alpha_ref[1]            # PReLU slope of the GCN      (SMEM scalar)

    x3 = x_ref[...]                                   # (Bt, L, Dp) f32, kept for residual
    x2 = x3.reshape(Bt * L, Dp)                       # minor dim preserved -> cheap reshape

    # ---- node MLP: Linear + folded BatchNorm + PReLU on all Bt*L rows at once ----
    mm = jnp.dot(x2.astype(jnp.bfloat16), w1t_ref[...],
                 preferred_element_type=jnp.float32)  # (Bt*L, Dp) f32 accumulate
    bn = mm * nscale_ref[...] + nshift_ref[...]       # BN + Linear bias folded on host
    node = jnp.where(bn >= 0.0, bn, a1 * bn)

    # ---- GCN dense transform for all rows at once ----
    xw = jnp.dot(node.astype(jnp.bfloat16), wgt_ref[...],
                 preferred_element_type=jnp.float32).reshape(Bt, L, Dp)

    # ---- batched symmetric-normalized aggregation ----
    # ah_ref is target-major: a_hat[b, i, j] = 1 iff edge j->i (self loops pre-added).
    a_hat = ah_ref[...]                               # (Bt, L, L) bf16
    # In-degree per target node via XLU lane-reduce (exact for integer counts, L <= 2^24).
    deg = jnp.sum(a_hat.astype(jnp.float32), axis=2, keepdims=True)    # (Bt, L, 1)
    dinv = jnp.where(deg > 0.0, jax.lax.rsqrt(deg), 0.0)               # D^-1/2

    y = (dinv * xw).astype(jnp.bfloat16)              # scale source rows
    # z[b, i, d] = sum_j a_hat[b, i, j] * y[b, j, d]   (single batched MXU contraction)
    z = jax.lax.dot_general(a_hat, y, (((2,), (1,)), ((0,), (0,))),
                            preferred_element_type=jnp.float32)        # (Bt, L, Dp)

    # ---- epilogue: bias, PReLU, L2-normalize (EUP rsqrt), residual ----
    g = dinv * z + bg_ref[...].reshape(1, 1, Dp)
    g = jnp.where(g >= 0.0, g, a2 * g)
    ss = jnp.sum(g * g, axis=-1, keepdims=True)
    g_n = g * jax.lax.rsqrt(jnp.maximum(ss, 1e-24))
    out_ref[...] = g_n + x3


def _pick_bt(b, l, max_rows=2048):
    """Largest divisor of b with bt*l rows per step; prefer >= 2 grid steps (v7x megacore)."""
    best = 1
    best_multi = None
    for cand in range(1, b + 1):
        if b % cand or cand * l > max_rows:
            continue
        best = cand
        if b // cand >= 2:
            best_multi = cand
    return best_multi if best_multi is not None else best


def _padded_bytes(shape, itemsize):
    """Bytes of a VMEM block with its last two dims rounded up to the dtype tile."""
    sub = {4: 8, 2: 16, 1: 32}[itemsize]
    dims = list(shape)
    dims[-1] = -(-dims[-1] // 128) * 128
    if len(dims) >= 2:
        dims[-2] = -(-dims[-2] // sub) * sub
    n = 1
    for d in dims:
        n *= d
    return n * itemsize


def text_graph_forward(text_feature, adj, params):
    B, L, D = text_feature.shape
    Dp = -(-D // 128) * 128                 # lane-dense feature dim
    Bt = _pick_bt(B, L)
    grid = (B // Bt,)

    # ---- host-side input prep ----
    x = text_feature.astype(jnp.float32)
    fresh_input = (Dp != D) or (text_feature.dtype != jnp.float32)
    if Dp != D:
        x = jnp.pad(x, ((0, 0), (0, 0), (0, Dp - D)))

    # Binarize adj (torch.nonzero semantics), add self loops, transpose to target-major, bf16.
    a_bin = (adj != 0).astype(jnp.float32)
    eye = jnp.eye(L, dtype=jnp.float32)
    a_hat_t = jnp.maximum(jnp.swapaxes(a_bin, 1, 2), eye[None]).astype(jnp.bfloat16)

    f32 = lambda a: jnp.asarray(a, jnp.float32)
    # Fold BatchNorm (inference) and the Linear bias into one scale/shift pair.
    inv_std = jax.lax.rsqrt(f32(params["var"]) + 1e-5)
    s = f32(params["gamma"]) * inv_std
    nscale = s
    nshift = f32(params["beta"]) + (f32(params["b1"]) - f32(params["mean"])) * s
    w1t = f32(params["w1"]).T
    wgt = f32(params["wg"]).T
    bg = f32(params["bg"])
    if Dp != D:
        nscale = jnp.pad(nscale, ((0, Dp - D),))
        nshift = jnp.pad(nshift, ((0, Dp - D),))
        bg = jnp.pad(bg, ((0, Dp - D),))
        w1t = jnp.pad(w1t, ((0, Dp - D), (0, Dp - D)))
        wgt = jnp.pad(wgt, ((0, Dp - D), (0, Dp - D)))
    nscale = nscale.reshape(1, Dp)
    nshift = nshift.reshape(1, Dp)
    bg = bg.reshape(1, Dp)
    w1t = w1t.astype(jnp.bfloat16)
    wgt = wgt.astype(jnp.bfloat16)
    alphas = jnp.stack([f32(params["prelu1"]).reshape(()),
                        f32(params["prelu2"]).reshape(())])     # (2,) -> SMEM scalars

    # ---- VMEM budget from tile-padded, double-buffered blocks ----
    blk = 2 * (2 * _padded_bytes((Bt, L, Dp), 4)        # x block + out block (f32)
               + _padded_bytes((Bt, L, L), 2)           # a_hat block (bf16)
               + 2 * _padded_bytes((Dp, Dp), 2)         # both weight tiles (bf16)
               + 3 * _padded_bytes((1, Dp), 4))         # scale / shift / bias vectors
    try:
        vmem_cap = int(pltpu.get_tpu_info().vmem_capacity_bytes)
    except Exception:
        vmem_cap = 64 * 1024 * 1024                     # conservative: v7x per-TC physical
    vmem_limit = int(min(int(0.75 * vmem_cap), max(32 * 1024 * 1024, 3 * blk)))
    vmem_limit = max(vmem_limit, 2 * blk)

    io_alias = {0: 0} if fresh_input else {}            # only alias a kernel-private buffer

    out = pl.pallas_call(
        _text_graph_kernel,
        out_shape=jax.ShapeDtypeStruct((B, L, Dp), jnp.float32),
        grid=grid,
        in_specs=[
            pl.BlockSpec((Bt, L, Dp), lambda g: (g, 0, 0)),      # x (f32, padded)
            pl.BlockSpec((Bt, L, L), lambda g: (g, 0, 0)),       # a_hat target-major (bf16)
            pl.BlockSpec((Dp, Dp), lambda g: (0, 0)),            # W1^T (bf16)
            pl.BlockSpec((Dp, Dp), lambda g: (0, 0)),            # Wg^T (bf16)
            pl.BlockSpec((1, Dp), lambda g: (0, 0)),             # folded BN scale
            pl.BlockSpec((1, Dp), lambda g: (0, 0)),             # folded BN shift (incl. b1)
            pl.BlockSpec((1, Dp), lambda g: (0, 0)),             # GCN bias
            pl.BlockSpec(memory_space=pltpu.MemorySpace.SMEM),   # PReLU slopes (scalars)
        ],
        out_specs=pl.BlockSpec((Bt, L, Dp), lambda g: (g, 0, 0)),
        input_output_aliases=io_alias,
        compiler_params=pltpu.CompilerParams(
            dimension_semantics=("parallel",),
            vmem_limit_bytes=vmem_limit),
    )(x, a_hat_t, w1t, wgt, nscale, nshift, bg, alphas)

    return out[..., :D] if Dp != D else out


def _reference(text_feature, adj, p):
    # Pure-JAX f32 reference of the same forward pass (for correctness check).
    B, L, D = text_feature.shape
    x = text_feature.reshape(-1, D)
    lin = x @ p["w1"].T + p["b1"]
    bn = (lin - p["mean"]) / jnp.sqrt(p["var"] + 1e-5) * p["gamma"] + p["beta"]
    node = jnp.where(bn >= 0, bn, p["prelu1"] * bn).reshape(B, L, D)
    a_bin = (adj != 0).astype(jnp.float32)
    eye = jnp.eye(L, dtype=jnp.float32)[None]
    a_hat = jnp.maximum(a_bin, eye)
    deg = jnp.sum(a_hat, axis=1)                                  # (B, L) in-degree
    dinv = jnp.where(deg > 0, 1.0 / jnp.sqrt(deg), 0.0)
    norm = dinv[:, :, None] * a_hat * dinv[:, None, :]            # norm[b, j, i]
    xw = node @ p["wg"].T
    g = jnp.einsum("bji,bjd->bid", norm, xw) + p["bg"]
    g = jnp.where(g >= 0, g, p["prelu2"] * g)
    nrm = jnp.sqrt(jnp.sum(g * g, axis=-1, keepdims=True))
    return g / jnp.maximum(nrm, 1e-12) + text_feature


if __name__ == "__main__":
    B, L, D = 2, 8, 32   # batch=2, seq=8, text_dim=32
    key = jax.random.PRNGKey(0)
    keys = jax.random.split(key, 10)

    text_feature = jax.random.normal(keys[0], (B, L, D), dtype=jnp.float32)
    adj = (jax.random.uniform(keys[1], (B, L, L)) < 0.3).astype(jnp.int8)

    params = {
        "w1": jax.random.normal(keys[2], (D, D), jnp.float32) * (1.0 / jnp.sqrt(D)),
        "b1": jax.random.normal(keys[3], (D,), jnp.float32) * 0.1,
        "gamma": 1.0 + 0.1 * jax.random.normal(keys[4], (D,), jnp.float32),
        "beta": 0.1 * jax.random.normal(keys[5], (D,), jnp.float32),
        "mean": 0.05 * jax.random.normal(keys[6], (D,), jnp.float32),
        "var": 1.0 + 0.1 * jax.random.uniform(keys[7], (D,), jnp.float32),
        "wg": jax.random.normal(keys[8], (D, D), jnp.float32) * (1.0 / jnp.sqrt(D)),
        "bg": jax.random.normal(keys[9], (D,), jnp.float32) * 0.1,
        "prelu1": jnp.float32(0.25),   # PyTorch PReLU default init
        "prelu2": jnp.float32(0.25),
    }

    out = jax.block_until_ready(text_graph_forward(text_feature, adj, params))
    ref = jax.block_until_ready(_reference(text_feature, adj, params))
    assert out.shape == (B, L, D)
    # bf16 MXU operands -> validate against the f32 reference with a bf16-appropriate tolerance.
    assert jnp.allclose(out, ref, atol=3e-2, rtol=3e-2), "mismatch vs JAX reference"
    print("KERNEL_OK")
</pallas_src>

<mosaic_0001>
module attributes {stable_mosaic.version = 11 : i64} {
  func.func @_text_graph_kernel(%arg0: i32, %arg1: memref<1x8x128xf32, #tpu.memory_space<vmem>>, %arg2: memref<1x8x8xbf16, #tpu.memory_space<vmem>>, %arg3: memref<128x128xbf16, #tpu.memory_space<vmem>>, %arg4: memref<128x128xbf16, #tpu.memory_space<vmem>>, %arg5: memref<1x128xf32, #tpu.memory_space<vmem>>, %arg6: memref<1x128xf32, #tpu.memory_space<vmem>>, %arg7: memref<1x128xf32, #tpu.memory_space<vmem>>, %arg8: memref<2xf32, #tpu.memory_space<smem>>, %arg9: memref<1x8x128xf32, #tpu.memory_space<vmem>>) attributes {dimension_semantics = [#tpu.dimension_semantics<parallel>], iteration_bounds = array<i64: 2>, scalar_prefetch = 0 : i64, scratch_operands = 0 : i64, tpu.core_type = #tpu.core_type<tc>, window_params = [{transform_indices = @transform_0, window_bounds = array<i64: 1, 8, 128>}, {transform_indices = @transform_1, window_bounds = array<i64: 1, 8, 8>}, {pipeline_mode = #tpu.pipeline_mode<synchronous>, transform_indices = @transform_2, window_bounds = array<i64: 128, 128>}, {pipeline_mode = #tpu.pipeline_mode<synchronous>, transform_indices = @transform_3, window_bounds = array<i64: 128, 128>}, {pipeline_mode = #tpu.pipeline_mode<synchronous>, transform_indices = @transform_4, window_bounds = array<i64: 1, 128>}, {pipeline_mode = #tpu.pipeline_mode<synchronous>, transform_indices = @transform_5, window_bounds = array<i64: 1, 128>}, {pipeline_mode = #tpu.pipeline_mode<synchronous>, transform_indices = @transform_6, window_bounds = array<i64: 1, 128>}, {transform_indices = @transform_7, window_bounds = array<i64: 2>}, {transform_indices = @transform_8, window_bounds = array<i64: 1, 8, 128>}]} {
    %c0 = arith.constant 0 : index
    %0 = memref.load %arg8[%c0] : memref<2xf32, #tpu.memory_space<smem>>
    %c1 = arith.constant 1 : index
    %1 = memref.load %arg8[%c1] : memref<2xf32, #tpu.memory_space<smem>>
    %c0_0 = arith.constant 0 : index
    %c0_1 = arith.constant 0 : index
    %c0_2 = arith.constant 0 : index
    %2 = vector.load %arg1[%c0_0, %c0_1, %c0_2] : memref<1x8x128xf32, #tpu.memory_space<vmem>>, vector<1x8x128xf32>
    %3 = vector.shape_cast %2 : vector<1x8x128xf32> to vector<8x128xf32>
    %4 = arith.truncf %3 : vector<8x128xf32> to vector<8x128xbf16>
    %c0_3 = arith.constant 0 : index
    %c0_4 = arith.constant 0 : index
    %5 = vector.load %arg3[%c0_3, %c0_4] : memref<128x128xbf16, #tpu.memory_space<vmem>>, vector<128x128xbf16>
    %cst = arith.constant dense<0.000000e+00> : vector<8x128xf32>
    %6 = tpu.matmul %4, %5, %cst {dimension_numbers = #tpu.dot_dimension_numbers<[1], [0], [0], [1], [0, 0, 1, 1], [], []>} : vector<8x128xbf16>, vector<128x128xbf16>, vector<8x128xf32> -> vector<8x128xf32>
    %c0_5 = arith.constant 0 : index
    %c0_6 = arith.constant 0 : index
    %7 = vector.load %arg5[%c0_5, %c0_6] : memref<1x128xf32, #tpu.memory_space<vmem>>, vector<1x128xf32>
    %8 = vector.broadcast %7 : vector<1x128xf32> to vector<8x128xf32>
    %9 = arith.mulf %6, %8 : vector<8x128xf32>
    %c0_7 = arith.constant 0 : index
    %c0_8 = arith.constant 0 : index
    %10 = vector.load %arg6[%c0_7, %c0_8] : memref<1x128xf32, #tpu.memory_space<vmem>>, vector<1x128xf32>
    %11 = vector.broadcast %10 : vector<1x128xf32> to vector<8x128xf32>
    %12 = arith.addf %9, %11 : vector<8x128xf32>
    %cst_9 = arith.constant 0.000000e+00 : f32
    %13 = vector.broadcast %cst_9 : f32 to vector<8x128xf32>
    %14 = arith.cmpf oge, %12, %13 : vector<8x128xf32>
    %15 = vector.broadcast %0 : f32 to vector<8x128xf32>
    %16 = arith.mulf %15, %12 : vector<8x128xf32>
    %17 = arith.select %14, %12, %16 : vector<8x128xi1>, vector<8x128xf32>
    %18 = arith.truncf %17 : vector<8x128xf32> to vector<8x128xbf16>
    %c0_10 = arith.constant 0 : index
    %c0_11 = arith.constant 0 : index
    %19 = vector.load %arg4[%c0_10, %c0_11] : memref<128x128xbf16, #tpu.memory_space<vmem>>, vector<128x128xbf16>
    %cst_12 = arith.constant dense<0.000000e+00> : vector<8x128xf32>
    %20 = tpu.matmul %18, %19, %cst_12 {dimension_numbers = #tpu.dot_dimension_numbers<[1], [0], [0], [1], [0, 0, 1, 1], [], []>} : vector<8x128xbf16>, vector<128x128xbf16>, vector<8x128xf32> -> vector<8x128xf32>
    %21 = vector.shape_cast %20 : vector<8x128xf32> to vector<1x8x128xf32>
    %c0_13 = arith.constant 0 : index
    %c0_14 = arith.constant 0 : index
    %c0_15 = arith.constant 0 : index
    %22 = vector.load %arg2[%c0_13, %c0_14, %c0_15] : memref<1x8x8xbf16, #tpu.memory_space<vmem>>, vector<1x8x8xbf16>
    %23 = arith.extf %22 : vector<1x8x8xbf16> to vector<1x8x8xf32>
    %cst_16 = arith.constant dense<0.000000e+00> : vector<1x8xf32>
    %24 = vector.multi_reduction <add>, %23, %cst_16 [2] : vector<1x8x8xf32> to vector<1x8xf32>
    %25 = vector.shape_cast %24 : vector<1x8xf32> to vector<1x8x1xf32>
    %cst_17 = arith.constant 0.000000e+00 : f32
    %26 = vector.broadcast %cst_17 : f32 to vector<1x8x1xf32>
    %27 = arith.cmpf ogt, %25, %26 : vector<1x8x1xf32>
    %28 = math.rsqrt %25 : vector<1x8x1xf32>
    %cst_18 = arith.constant 0.000000e+00 : f32
    %29 = vector.broadcast %cst_18 : f32 to vector<1x8x1xf32>
    %30 = arith.select %27, %28, %29 : vector<1x8x1xi1>, vector<1x8x1xf32>
    %31 = vector.broadcast %30 : vector<1x8x1xf32> to vector<1x8x128xf32>
    %32 = arith.mulf %31, %21 : vector<1x8x128xf32>
    %33 = arith.truncf %32 : vector<1x8x128xf32> to vector<1x8x128xbf16>
    %cst_19 = arith.constant dense<0.000000e+00> : vector<1x8x128xf32>
    %34 = tpu.matmul %22, %33, %cst_19 {dimension_numbers = #tpu.dot_dimension_numbers<[2], [1], [1], [2], [0, 0, 0, 1, 1, 2], [0], [0]>} : vector<1x8x8xbf16>, vector<1x8x128xbf16>, vector<1x8x128xf32> -> vector<1x8x128xf32>
    %35 = vector.broadcast %30 : vector<1x8x1xf32> to vector<1x8x128xf32>
    %36 = arith.mulf %35, %34 : vector<1x8x128xf32>
    %c0_20 = arith.constant 0 : index
    %c0_21 = arith.constant 0 : index
    %37 = vector.load %arg7[%c0_20, %c0_21] : memref<1x128xf32, #tpu.memory_space<vmem>>, vector<1x128xf32>
    %38 = vector.shape_cast %37 : vector<1x128xf32> to vector<1x1x128xf32>
    %39 = vector.broadcast %38 : vector<1x1x128xf32> to vector<1x8x128xf32>
    %40 = arith.addf %36, %39 : vector<1x8x128xf32>
    %cst_22 = arith.constant 0.000000e+00 : f32
    %41 = vector.broadcast %cst_22 : f32 to vector<1x8x128xf32>
    %42 = arith.cmpf oge, %40, %41 : vector<1x8x128xf32>
    %43 = vector.broadcast %1 : f32 to vector<1x8x128xf32>
    %44 = arith.mulf %43, %40 : vector<1x8x128xf32>
    %45 = arith.select %42, %40, %44 : vector<1x8x128xi1>, vector<1x8x128xf32>
    %46 = arith.mulf %45, %45 : vector<1x8x128xf32>
    %cst_23 = arith.constant dense<0.000000e+00> : vector<1x8xf32>
    %47 = vector.multi_reduction <add>, %46, %cst_23 [2] : vector<1x8x128xf32> to vector<1x8xf32>
    %48 = vector.shape_cast %47 : vector<1x8xf32> to vector<1x8x1xf32>
    %cst_24 = arith.constant 1.000000e-24 : f32
    %49 = vector.broadcast %cst_24 : f32 to vector<1x8x1xf32>
    %50 = arith.maximumf %48, %49 : vector<1x8x1xf32>
    %51 = math.rsqrt %50 : vector<1x8x1xf32>
    %52 = vector.broadcast %51 : vector<1x8x1xf32> to vector<1x8x128xf32>
    %53 = arith.mulf %45, %52 : vector<1x8x128xf32>
    %54 = arith.addf %53, %2 : vector<1x8x128xf32>
    %c0_25 = arith.constant 0 : index
    %c0_26 = arith.constant 0 : index
    %c0_27 = arith.constant 0 : index
    %55 = vector.load %arg9[%c0_25, %c0_26, %c0_27] : memref<1x8x128xf32, #tpu.memory_space<vmem>>, vector<1x8x128xf32>
    tpu.vector_store %arg9[%c0_25, %c0_26, %c0_27], %54 {strides = array<i32>} : memref<1x8x128xf32, #tpu.memory_space<vmem>>, vector<1x8x128xf32>,
    return
  }
  func.func @transform_0(%arg0: i32) -> (i32, i32, i32) {
    %c0_i32 = arith.constant 0 : i32
    %c0_i32_0 = arith.constant 0 : i32
    %c0_i32_1 = arith.constant 0 : i32
    return %arg0, %c0_i32, %c0_i32_0 : i32, i32, i32
  }
  func.func @transform_1(%arg0: i32) -> (i32, i32, i32) {
    %c0_i32 = arith.constant 0 : i32
    %c0_i32_0 = arith.constant 0 : i32
    %c0_i32_1 = arith.constant 0 : i32
    return %arg0, %c0_i32, %c0_i32_0 : i32, i32, i32
  }
  func.func @transform_2(%arg0: i32) -> (i32, i32) {
    %c0_i32 = arith.constant 0 : i32
    %c0_i32_0 = arith.constant 0 : i32
    %c0_i32_1 = arith.constant 0 : i32
    return %c0_i32, %c0_i32_0 : i32, i32
  }
  func.func @transform_3(%arg0: i32) -> (i32, i32) {
    %c0_i32 = arith.constant 0 : i32
    %c0_i32_0 = arith.constant 0 : i32
    %c0_i32_1 = arith.constant 0 : i32
    return %c0_i32, %c0_i32_0 : i32, i32
  }
  func.func @transform_4(%arg0: i32) -> (i32, i32) {
    %c0_i32 = arith.constant 0 : i32
    %c0_i32_0 = arith.constant 0 : i32
    %c0_i32_1 = arith.constant 0 : i32
    return %c0_i32, %c0_i32_0 : i32, i32
  }
  func.func @transform_5(%arg0: i32) -> (i32, i32) {
    %c0_i32 = arith.constant 0 : i32
    %c0_i32_0 = arith.constant 0 : i32
    %c0_i32_1 = arith.constant 0 : i32
    return %c0_i32, %c0_i32_0 : i32, i32
  }
  func.func @transform_6(%arg0: i32) -> (i32, i32) {
    %c0_i32 = arith.constant 0 : i32
    %c0_i32_0 = arith.constant 0 : i32
    %c0_i32_1 = arith.constant 0 : i32
    return %c0_i32, %c0_i32_0 : i32, i32
  }
  func.func @transform_7(%arg0: i32) -> i32 {
    %c0_i32 = arith.constant 0 : i32
    %c0_i32_0 = arith.constant 0 : i32
    return %c0_i32 : i32
  }
  func.func @transform_8(%arg0: i32) -> (i32, i32, i32) {
    %c0_i32 = arith.constant 0 : i32
    %c0_i32_0 = arith.constant 0 : i32
    %c0_i32_1 = arith.constant 0 : i32
    return %arg0, %c0_i32, %c0_i32_0 : i32, i32, i32
  }
}

</mosaic_0001>

<llo_original>
// kernel: tpu_custom_call.1
$region0: #{tpu_custom_call.1}
  #allocation0 [shape = 'u32[]', space=smem, size = 0x4, offset = 0x4, fixed_abs, tag = 'smem constant byte address 0x4 - core index']
  #allocation1 [shape = 'u32[144,128]{1,0:T(1,128)}', space=vmem, size = 0x12000, scoped, tag = 'internal scratch']
  %s0 = inlined_call_operand.hbm [shape: f32[2,8,128], index: 0, kind: input, shape index: {}, may-alias: {0,8}]
  %s1 = inlined_call_operand.vmem [shape: bf16[2,8,8], index: 1, kind: input, shape index: {}]
  %s2 = inlined_call_operand.hbm [shape: bf16[128,128], index: 2, kind: input, shape index: {}]
  %s3 = inlined_call_operand.hbm [shape: bf16[128,128], index: 3, kind: input, shape index: {}]
  %s4 = inlined_call_operand.vmem [shape: f32[1,128], index: 4, kind: input, shape index: {}]
  %s5 = inlined_call_operand.vmem [shape: f32[1,128], index: 5, kind: input, shape index: {}]
  %s6 = inlined_call_operand.vmem [shape: f32[1,128], index: 6, kind: input, shape index: {}]
  %s7 = inlined_call_operand.vmem [shape: f32[2], index: 7, kind: input, shape index: {}]
  %s8 = inlined_call_operand.hbm [shape: f32[2,8,128], index: 8, kind: output, shape index: {}, may-alias: {0,8}]
  %s9 = sld [smem:[#allocation0]]
  $region81: #{tpu_custom_call.1} parent=0
    _
  %s11 = ssub.s32 1, %s9
  %s12 = scalar_select 0, %s11, %s9
  $region1: #{tpu_custom_call.1} parent=0
    #allocation2 [shape = 'u8[8192]{0}', space=vmem, size = 0x2000, scoped, tag = 'input window, operand 0']
    #allocation3 [shape = 's32[2]{0}', space=sflag, size = 0x8, scoped, tag = 'scoped memory for tpu_custom_call.1']
    #allocation4 [shape = 's32[2]{0}', space=sflag, size = 0x8, scoped, tag = 'scoped memory for tpu_custom_call.1']
    #allocation5 [shape = 's32[2]{0}', space=sflag, size = 0x8, scoped, tag = 'scoped memory for tpu_custom_call.1']
    #allocation6 [shape = 'u8[32768]{0}', space=vmem, size = 0x8000, scoped, tag = 'input window, operand 2, single buffered']
    #allocation7 [shape = 's32[1]{0}', space=sflag, size = 0x4, scoped, tag = 'scoped memory for tpu_custom_call.1']
    #allocation8 [shape = 'u8[32768]{0}', space=vmem, size = 0x8000, scoped, tag = 'input window, operand 3, single buffered']
    #allocation9 [shape = 'u8[512]{0}', space=smem, size = 0x200, scoped, tag = 'input window, operand 7, single buffered']
    #allocation10 [shape = 'u8[8192]{0}', space=vmem, size = 0x2000, scoped, tag = 'output window, operand 0']
    %13 = vsyncpa [#allocation3], 0
    %s14 = scalar_lea.sflag [#allocation3], 1
    %15 = vsyncpa %s14, 0
    %16 = vsyncpa [#allocation7], 0
    %17 = vsyncpa [#allocation5], 0
    %18 = vsyncpa [#allocation4], 0
    %s19 = scalar_lea.sflag [#allocation4], 1
    %20 = vsyncpa %s19, 0
    loop: start=0, step=1, limit=4
    $region2: #{tpu_custom_call.1} parent=1 // loop_pre_header
      _
    $region3: #{tpu_custom_call.1} parent=1 // loop_header
      %s22 = sphi 0, %s26
      %p23 = scmp.ge.s32.totalorder %s22, 4
      %s32 = sphi 0, %s34
      %s35 = sphi 0, %s32
      %s36 = sphi 0, %s35
      %s52 = sphi 0, %s36
      %s58 = sphi 0, %s60
      %s61 = sphi 0, %s58
      %s62 = sphi 0, %s61
      %s78 = sphi 0, %s62
      %s82 = sphi 0, %s82
      %s84 = sphi 0, %s82
      %s85 = sphi 0, %s84
      %s99 = sphi 0, %s85
      %s103 = sphi 0, %s103
      %s105 = sphi 0, %s103
      %s106 = sphi 0, %s105
      %s120 = sphi 0, %s106
      %s124 = sphi 0, %s124
      %s126 = sphi 0, %s124
      %s127 = sphi 0, %s126
      %s141 = sphi 0, %s127
      %s145 = sphi 0, %s145
      %s147 = sphi 0, %s145
      %s148 = sphi 0, %s147
      %s162 = sphi 0, %s148
      %s166 = sphi 0, %s166
      %s168 = sphi 0, %s166
      %s169 = sphi 0, %s168
      %s183 = sphi 0, %s169
      %s187 = sphi 0, %s187
      %s189 = sphi 0, %s187
      %s190 = sphi 0, %s189
      %s204 = sphi 0, %s190
      %s210 = sphi 0, %s212
      %s213 = sphi 0, %s210
      %s214 = sphi 0, %s213
      %s230 = sphi 0, %s214
    $region4: #{tpu_custom_call.1} parent=1 // loop_header_branch
      %25 = sbr.rel (%p23) target = $region8
    $region5: #{tpu_custom_call.1} parent=1 // loop_body
      %s27 = ssub.s32 %s22, 1
      %s28 = ssub.s32 %s22, 2
      %s29 = sadd.s32 %s22, 1
      %s30 = ssub.s32 %s22, %s29
      %p31 = scmp.eq.s32.totalorder %s30, 0
      %s33 = sadd.s32 %s32, 1
      %s34 = scalar_select %p31, %s32, %s33
      %p37 = pneg %p31
      %p38 = scmp.eq.s32.totalorder %s22, 1
      %p39 = por %p37, %p38
      %p40 = scmp.ne.s32.totalorder %s32, %s35
      %p41 = scmp.eq.s32.totalorder %s22, 0
      %p42 = por %p40, %p41
      %p43 = scmp.ne.s32.totalorder %s32, %s35
      %p44 = scmp.eq.s32.totalorder %s27, 1
      %p45 = por %p43, %p44
      %p46 = scmp.ne.s32.totalorder %s35, %s36
      %p47 = scmp.eq.s32.totalorder %s27, 0
      %p48 = por %p46, %p47
      %p49 = scmp.ne.s32.totalorder %s35, %s36
      %p50 = scmp.eq.s32.totalorder %s28, 1
      %p51 = por %p49, %p50
      %p53 = scmp.ne.s32.totalorder %s36, %s52
      %p54 = scmp.eq.s32.totalorder %s28, 0
      %p55 = por %p53, %p54
      %s56 = ssub.s32 %s22, %s29
      %p57 = scmp.eq.s32.totalorder %s56, 0
      %s59 = sadd.s32 %s58, 1
      %s60 = scalar_select %p57, %s58, %s59
      %p63 = pneg %p57
      %p64 = scmp.eq.s32.totalorder %s22, 1
      %p65 = por %p63, %p64
      %p66 = scmp.ne.s32.totalorder %s58, %s61
      %p67 = scmp.eq.s32.totalorder %s22, 0
      %p68 = por %p66, %p67
      %p69 = scmp.ne.s32.totalorder %s58, %s61
      %p70 = scmp.eq.s32.totalorder %s27, 1
      %p71 = por %p69, %p70
      %p72 = scmp.ne.s32.totalorder %s61, %s62
      %p73 = scmp.eq.s32.totalorder %s27, 0
      %p74 = por %p72, %p73
      %p75 = scmp.ne.s32.totalorder %s61, %s62
      %p76 = scmp.eq.s32.totalorder %s28, 1
      %p77 = por %p75, %p76
      %p79 = scmp.ne.s32.totalorder %s62, %s78
      %p80 = scmp.eq.s32.totalorder %s28, 0
      %p81 = por %p79, %p80
      %s83 = sadd.s32 %s82, 1
      %p86 = scmp.eq.s32.totalorder %s22, 1
      %p87 = scmp.ne.s32.totalorder %s82, %s84
      %p88 = scmp.eq.s32.totalorder %s22, 0
      %p89 = por %p87, %p88
      %p90 = scmp.ne.s32.totalorder %s82, %s84
      %p91 = scmp.eq.s32.totalorder %s27, 1
      %p92 = por %p90, %p91
      %p93 = scmp.ne.s32.totalorder %s84, %s85
      %p94 = scmp.eq.s32.totalorder %s27, 0
      %p95 = por %p93, %p94
      %p96 = scmp.ne.s32.totalorder %s84, %s85
      %p97 = scmp.eq.s32.totalorder %s28, 1
      %p98 = por %p96, %p97
      %p100 = scmp.ne.s32.totalorder %s85, %s99
      %p101 = scmp.eq.s32.totalorder %s28, 0
      %p102 = por %p100, %p101
      %s104 = sadd.s32 %s103, 1
      %p107 = scmp.eq.s32.totalorder %s22, 1
      %p108 = scmp.ne.s32.totalorder %s103, %s105
      %p109 = scmp.eq.s32.totalorder %s22, 0
      %p110 = por %p108, %p109
      %p111 = scmp.ne.s32.totalorder %s103, %s105
      %p112 = scmp.eq.s32.totalorder %s27, 1
      %p113 = por %p111, %p112
      %p114 = scmp.ne.s32.totalorder %s105, %s106
      %p115 = scmp.eq.s32.totalorder %s27, 0
      %p116 = por %p114, %p115
      %p117 = scmp.ne.s32.totalorder %s105, %s106
      %p118 = scmp.eq.s32.totalorder %s28, 1
      %p119 = por %p117, %p118
      %p121 = scmp.ne.s32.totalorder %s106, %s120
      %p122 = scmp.eq.s32.totalorder %s28, 0
      %p123 = por %p121, %p122
      %s125 = sadd.s32 %s124, 1
      %p128 = scmp.eq.s32.totalorder %s22, 1
      %p129 = scmp.ne.s32.totalorder %s124, %s126
      %p130 = scmp.eq.s32.totalorder %s22, 0
      %p131 = por %p129, %p130
      %p132 = scmp.ne.s32.totalorder %s124, %s126
      %p133 = scmp.eq.s32.totalorder %s27, 1
      %p134 = por %p132, %p133
      %p135 = scmp.ne.s32.totalorder %s126, %s127
      %p136 = scmp.eq.s32.totalorder %s27, 0
      %p137 = por %p135, %p136
      %p138 = scmp.ne.s32.totalorder %s126, %s127
      %p139 = scmp.eq.s32.totalorder %s28, 1
      %p140 = por %p138, %p139
      %p142 = scmp.ne.s32.totalorder %s127, %s141
      %p143 = scmp.eq.s32.totalorder %s28, 0
      %p144 = por %p142, %p143
      %s146 = sadd.s32 %s145, 1
      %p149 = scmp.eq.s32.totalorder %s22, 1
      %p150 = scmp.ne.s32.totalorder %s145, %s147
      %p151 = scmp.eq.s32.totalorder %s22, 0
      %p152 = por %p150, %p151
      %p153 = scmp.ne.s32.totalorder %s145, %s147
      %p154 = scmp.eq.s32.totalorder %s27, 1
      %p155 = por %p153, %p154
      %p156 = scmp.ne.s32.totalorder %s147, %s148
      %p157 = scmp.eq.s32.totalorder %s27, 0
      %p158 = por %p156, %p157
      %p159 = scmp.ne.s32.totalorder %s147, %s148
      %p160 = scmp.eq.s32.totalorder %s28, 1
      %p161 = por %p159, %p160
      %p163 = scmp.ne.s32.totalorder %s148, %s162
      %p164 = scmp.eq.s32.totalorder %s28, 0
      %p165 = por %p163, %p164
      %s167 = sadd.s32 %s166, 1
      %p170 = scmp.eq.s32.totalorder %s22, 1
      %p171 = scmp.ne.s32.totalorder %s166, %s168
      %p172 = scmp.eq.s32.totalorder %s22, 0
      %p173 = por %p171, %p172
      %p174 = scmp.ne.s32.totalorder %s166, %s168
      %p175 = scmp.eq.s32.totalorder %s27, 1
      %p176 = por %p174, %p175
      %p177 = scmp.ne.s32.totalorder %s168, %s169
      %p178 = scmp.eq.s32.totalorder %s27, 0
      %p179 = por %p177, %p178
      %p180 = scmp.ne.s32.totalorder %s168, %s169
      %p181 = scmp.eq.s32.totalorder %s28, 1
      %p182 = por %p180, %p181
      %p184 = scmp.ne.s32.totalorder %s169, %s183
      %p185 = scmp.eq.s32.totalorder %s28, 0
      %p186 = por %p184, %p185
      %s188 = sadd.s32 %s187, 1
      %p191 = scmp.eq.s32.totalorder %s22, 1
      %p192 = scmp.ne.s32.totalorder %s187, %s189
      %p193 = scmp.eq.s32.totalorder %s22, 0
      %p194 = por %p192, %p193
      %p195 = scmp.ne.s32.totalorder %s187, %s189
      %p196 = scmp.eq.s32.totalorder %s27, 1
      %p197 = por %p195, %p196
      %p198 = scmp.ne.s32.totalorder %s189, %s190
      %p199 = scmp.eq.s32.totalorder %s27, 0
      %p200 = por %p198, %p199
      %p201 = scmp.ne.s32.totalorder %s189, %s190
      %p202 = scmp.eq.s32.totalorder %s28, 1
      %p203 = por %p201, %p202
      %p205 = scmp.ne.s32.totalorder %s190, %s204
      %p206 = scmp.eq.s32.totalorder %s28, 0
      %p207 = por %p205, %p206
      %s208 = ssub.s32 %s22, %s29
      %p209 = scmp.eq.s32.totalorder %s208, 0
      %s211 = sadd.s32 %s210, 1
      %s212 = scalar_select %p209, %s210, %s211
      %p215 = pneg %p209
      %p216 = scmp.eq.s32.totalorder %s22, 1
      %p217 = por %p215, %p216
      %p218 = scmp.ne.s32.totalorder %s210, %s213
      %p219 = scmp.eq.s32.totalorder %s22, 0
      %p220 = por %p218, %p219
      %p221 = scmp.ne.s32.totalorder %s210, %s213
      %p222 = scmp.eq.s32.totalorder %s27, 1
      %p223 = por %p221, %p222
      %p224 = scmp.ne.s32.totalorder %s213, %s214
      %p225 = scmp.eq.s32.totalorder %s27, 0
      %p226 = por %p224, %p225
      %p227 = scmp.ne.s32.totalorder %s213, %s214
      %p228 = scmp.eq.s32.totalorder %s28, 1
      %p229 = por %p227, %p228
      %p231 = scmp.ne.s32.totalorder %s214, %s230
      %p232 = scmp.eq.s32.totalorder %s28, 0
      %p233 = por %p231, %p232
      %p234 = scmp.le.s32.totalorder 1, %s22
      %p235 = scmp.lt.s32.totalorder %s22, 3
      %p236 = pnand %p234, %p235
      %p237 = pneg %p236
      // Predicated region
      $region9: #{tpu_custom_call.1} parent=5 // pred_check
        _
      $region10: #{tpu_custom_call.1} parent=5 // pred_check_branch
        %239 = sbr.rel (%p236) target = $region12
      $region11: #{tpu_custom_call.1} parent=5 // pred_region
        %s240 = ssub.s32 %s22, 1
        // Predicated region
        $region13: #{tpu_custom_call.1} parent=11 // pred_check
          %p241 = pneg %p95
        $region14: #{tpu_custom_call.1} parent=11 // pred_check_branch
          %243 = sbr.rel (%p241) target = $region16
        $region15: #{tpu_custom_call.1} parent=11 // pred_region
          %s245 = ssub.s32 1024, 1024
          %246 = vsyncadd [#allocation7], %s245
          %s247 = sshll.u32 [#allocation6], 4
          %s248 = int_to_ptr.vmem [resolvable:$true] %s247
          %253 = dma.hbm_to_vmem [thread:$0]  %s2, 1024, %s248, [#allocation7], 64, 64, 4
        $region16: #{tpu_custom_call.1} parent=11 // pred_fallthru
          _
        // Predicated region
        $region17: #{tpu_custom_call.1} parent=11 // pred_check
          %p254 = pneg %p116
        $region18: #{tpu_custom_call.1} parent=11 // pred_check_branch
          %256 = sbr.rel (%p254) target = $region20
        $region19: #{tpu_custom_call.1} parent=11 // pred_region
          %s258 = ssub.s32 1024, 1024
          %259 = vsyncadd [#allocation7], %s258
          %s260 = sshll.u32 [#allocation8], 4
          %s261 = int_to_ptr.vmem [resolvable:$true] %s260
          %266 = dma.hbm_to_vmem [thread:$0]  %s3, 1024, %s261, [#allocation7], 64, 64, 4
        $region20: #{tpu_custom_call.1} parent=11 // pred_fallthru
          _
        // Predicated region
        $region21: #{tpu_custom_call.1} parent=11 // pred_check
          %p267 = pneg %p137
        $region22: #{tpu_custom_call.1} parent=11 // pred_check_branch
          %269 = sbr.rel (%p267) target = $region24
        $region23: #{tpu_custom_call.1} parent=11 // pred_region
          _
        $region24: #{tpu_custom_call.1} parent=11 // pred_fallthru
          _
        // Predicated region
        $region25: #{tpu_custom_call.1} parent=11 // pred_check
          %p270 = pneg %p158
        $region26: #{tpu_custom_call.1} parent=11 // pred_check_branch
          %272 = sbr.rel (%p270) target = $region28
        $region27: #{tpu_custom_call.1} parent=11 // pred_region
          _
        $region28: #{tpu_custom_call.1} parent=11 // pred_fallthru
          _
        // Predicated region
        $region29: #{tpu_custom_call.1} parent=11 // pred_check
          %p273 = pneg %p179
        $region30: #{tpu_custom_call.1} parent=11 // pred_check_branch
          %275 = sbr.rel (%p273) target = $region32
        $region31: #{tpu_custom_call.1} parent=11 // pred_region
          _
        $region32: #{tpu_custom_call.1} parent=11 // pred_fallthru
          _
        // Predicated region
        $region33: #{tpu_custom_call.1} parent=11 // pred_check
          %p276 = pneg %p200
        $region34: #{tpu_custom_call.1} parent=11 // pred_check_branch
          %278 = sbr.rel (%p276) target = $region36
        $region35: #{tpu_custom_call.1} parent=11 // pred_region
          %s280 = ssub.s32 16, 16
          %281 = vsyncadd [#allocation5], %s280
          %s283 = sshll.u32 %s7, 4
          %s284 = int_to_ptr.vmem [resolvable:$true] %s283
          %286 = dma.vmem_to_smem %s284, 16, [#allocation9], [#allocation5]
        $region36: #{tpu_custom_call.1} parent=11 // pred_fallthru
          _
      $region12: #{tpu_custom_call.1} parent=5 // pred_fallthru
        _
      %p287 = scmp.lt.s32.totalorder %s22, 2
      // Predicated region
      $region37: #{tpu_custom_call.1} parent=5 // pred_check
        %p288 = pneg %p287
      $region38: #{tpu_custom_call.1} parent=5 // pred_check_branch
        %290 = sbr.rel (%p288) target = $region40
      $region39: #{tpu_custom_call.1} parent=5 // pred_region
        // Predicated region
        $region41: #{tpu_custom_call.1} parent=39 // pred_check
          %p291 = pneg %p42
        $region42: #{tpu_custom_call.1} parent=39 // pred_check_branch
          %293 = sbr.rel (%p291) target = $region44
        $region43: #{tpu_custom_call.1} parent=39 // pred_region
          %s294 = sand.u32 %s32, 1
          %s295 = scalar_lea.sflag [#allocation3], %s294
          %s296 = sand.u32 %s32, 1
          %s297 = smul.addr %s296, 8
          %s298 = scalar_lea.vmem [#allocation2], %s297
          %s300 = ssub.s32 128, 128
          %301 = vsyncadd %s295, %s300
          %s302 = smul.addr %s22, 128
          %s303 = scalar_lea.hbm %s0, %s302
          %s305 = sshll.u32 %s298, 4
          %s306 = int_to_ptr.vmem [resolvable:$true] %s305
          %308 = dma.hbm_to_vmem [thread:$0]  %s303, 128, %s306, %s295
        $region44: #{tpu_custom_call.1} parent=39 // pred_fallthru
          _
        // Predicated region
        $region45: #{tpu_custom_call.1} parent=39 // pred_check
          %p309 = pneg %p68
        $region46: #{tpu_custom_call.1} parent=39 // pred_check_branch
          %311 = sbr.rel (%p309) target = $region48
        $region47: #{tpu_custom_call.1} parent=39 // pred_region
          %p312 = scmp.lt.s32.totalorder %s22, 1
          %s313 = scalar_select %p312, %s22, 1
          %s314 = smul.addr %s313, 4
          %s315 = scalar_lea.vmem %s1, %s314
        $region48: #{tpu_custom_call.1} parent=39 // pred_fallthru
          _
      $region40: #{tpu_custom_call.1} parent=5 // pred_fallthru
        _
      %p316 = scmp.le.s32.totalorder 1, %s22
      %p317 = scmp.lt.s32.totalorder %s22, 3
      %p318 = pnand %p316, %p317
      %p319 = pneg %p318
      // Predicated region
      $region49: #{tpu_custom_call.1} parent=5 // pred_check
        _
      $region50: #{tpu_custom_call.1} parent=5 // pred_check_branch
        %321 = sbr.rel (%p318) target = $region52
      $region51: #{tpu_custom_call.1} parent=5 // pred_region
        %s322 = ssub.s32 %s22, 1
        %s323 = sand.u32 %s35, 1
        %s324 = scalar_lea.sflag [#allocation3], %s323
        %s325 = sand.u32 %s35, 1
        %s326 = smul.addr %s325, 8
        %s327 = scalar_lea.vmem [#allocation2], %s326
        // Predicated region
        $region53: #{tpu_custom_call.1} parent=51 // pred_check
          %p328 = pneg %p48
        $region54: #{tpu_custom_call.1} parent=51 // pred_check_branch
          %330 = sbr.rel (%p328) target = $region56
        $region55: #{tpu_custom_call.1} parent=51 // pred_region
          %331 = dma.done %s324, 128
        $region56: #{tpu_custom_call.1} parent=51 // pred_fallthru
          _
        // Predicated region
        $region57: #{tpu_custom_call.1} parent=51 // pred_check
          %p332 = pneg %p95
        $region58: #{tpu_custom_call.1} parent=51 // pred_check_branch
          %334 = sbr.rel (%p332) target = $region60
        $region59: #{tpu_custom_call.1} parent=51 // pred_region
          %335 = dma.done [#allocation7], 1024
        $region60: #{tpu_custom_call.1} parent=51 // pred_fallthru
          _
        // Predicated region
        $region61: #{tpu_custom_call.1} parent=51 // pred_check
          %p336 = pneg %p116
        $region62: #{tpu_custom_call.1} parent=51 // pred_check_branch
          %338 = sbr.rel (%p336) target = $region64
        $region63: #{tpu_custom_call.1} parent=51 // pred_region
          %339 = dma.done [#allocation7], 1024
        $region64: #{tpu_custom_call.1} parent=51 // pred_fallthru
          _
        // Predicated region
        $region65: #{tpu_custom_call.1} parent=51 // pred_check
          %p340 = pneg %p200
        $region66: #{tpu_custom_call.1} parent=51 // pred_check_branch
          %342 = sbr.rel (%p340) target = $region68
        $region67: #{tpu_custom_call.1} parent=51 // pred_region
          %343 = dma.done [#allocation5], 16
        $region68: #{tpu_custom_call.1} parent=51 // pred_fallthru
          _
        %344 = sfence
        %s345 = sand.u32 %s35, 1
        %s346 = scalar_lea.sflag [#allocation3], %s345
        %s347 = sand.u32 %s35, 1
        %s348 = smul.addr %s347, 8
        %s349 = scalar_lea.vmem [#allocation2], %s348
        %p350 = pneg %p48
        %p351 = pneg %p45
        %p352 = scmp.lt.s32.totalorder %s27, 1
        %s353 = scalar_select %p352, %s27, 1
        %s354 = smul.addr %s353, 4
        %s355 = scalar_lea.vmem %s1, %s354
        %p356 = pneg %p74
        %p357 = pneg %p71
        %p358 = pneg %p95
        %p359 = pneg %p92
        %p360 = pneg %p116
        %p361 = pneg %p113
        %p362 = pneg %p137
        %p363 = pneg %p134
        %p364 = pneg %p158
        %p365 = pneg %p155
        %p366 = pneg %p179
        %p367 = pneg %p176
        %p368 = pneg %p200
        %p369 = pneg %p197
        %p370 = pneg %p226
        %p371 = pneg %p223
        %s372 = sand.u32 %s213, 1
        %s373 = scalar_lea.sflag [#allocation4], %s372
        %s374 = sand.u32 %s213, 1
        %s375 = smul.addr %s374, 8
        %s376 = scalar_lea.vmem [#allocation10], %s375
        %p377 = scmp.lt.s32.totalorder %s27, 1
        %s378 = scalar_select %p377, %s27, 1
        %s379 = smul.addr %s378, 4
        %s380 = scalar_lea.vmem %s1, %s379
        %s382 = sld [smem:[#allocation9]]
        %s383 = sld [smem:[#allocation9 + $0x1]]
        %v384 = vld [vmem:[%s327] sm:$0xff]
        %v385 = vpack.c.bf16 %v384, %v384
        %v386 = vld [vmem:[#allocation6] sm:$0xf]
        %v387 = vld [vmem:[#allocation6 + $0x4] sm:$0xf]
        %v388 = vld [vmem:[#allocation6 + $0x8] sm:$0xf]
        %v389 = vld [vmem:[#allocation6 + $0xc] sm:$0xf]
        %v390 = vld [vmem:[#allocation6 + $0x10] sm:$0xf]
        %v391 = vld [vmem:[#allocation6 + $0x14] sm:$0xf]
        %v392 = vld [vmem:[#allocation6 + $0x18] sm:$0xf]
        %v393 = vld [vmem:[#allocation6 + $0x1c] sm:$0xf]
        %v394 = vld [vmem:[#allocation6 + $0x20] sm:$0xf]
        %v395 = vld [vmem:[#allocation6 + $0x24] sm:$0xf]
        %v396 = vld [vmem:[#allocation6 + $0x28] sm:$0xf]
        %v397 = vld [vmem:[#allocation6 + $0x2c] sm:$0xf]
        %v398 = vld [vmem:[#allocation6 + $0x30] sm:$0xf]
        %v399 = vld [vmem:[#allocation6 + $0x34] sm:$0xf]
        %v400 = vld [vmem:[#allocation6 + $0x38] sm:$0xf]
        %v401 = vld [vmem:[#allocation6 + $0x3c] sm:$0xf]
        %v418 = vunpack.c.l.b16 %v386
        %v419 = vunpack.c.l.b16 %v387
        %v420 = vunpack.c.l.b16 %v388
        %v421 = vunpack.c.l.b16 %v389
        %v422 = vunpack.c.l.b16 %v390
        %v423 = vunpack.c.l.b16 %v391
        %v424 = vunpack.c.l.b16 %v392
        %v425 = vunpack.c.l.b16 %v393
        %v426 = vunpack.c.l.b16 %v394
        %v427 = vunpack.c.l.b16 %v395
        %v428 = vunpack.c.l.b16 %v396
        %v429 = vunpack.c.l.b16 %v397
        %v430 = vunpack.c.l.b16 %v398
        %v431 = vunpack.c.l.b16 %v399
        %v432 = vunpack.c.l.b16 %v400
        %v433 = vunpack.c.l.b16 %v401
        %v434 = vpack.c.b16 %v419, %v418
        %v435 = vpack.c.b16 %v421, %v420
        %v436 = vpack.c.b16 %v423, %v422
        %v437 = vpack.c.b16 %v425, %v424
        %v438 = vpack.c.b16 %v427, %v426
        %v439 = vpack.c.b16 %v429, %v428
        %v440 = vpack.c.b16 %v431, %v430
        %v441 = vpack.c.b16 %v433, %v432
        %450 = vmatprep.subr.bf16.mxu0 0
        %451 = vmatpush1.bf16.msra.mxu0 %v434
        %452 = vmatprep.subr.bf16.mxu0 0
        %453 = vmatpush1.bf16.msra.mxu0 %v435
        %454 = vmatprep.subr.bf16.mxu0 0
        %455 = vmatpush1.bf16.msra.mxu0 %v436
        %456 = vmatprep.subr.bf16.mxu0 0
        %457 = vmatpush1.bf16.msra.mxu0 %v437
        %458 = vmatprep.subr.bf16.mxu0 0
        %459 = vmatpush1.bf16.msra.mxu0 %v438
        %460 = vmatprep.subr.bf16.mxu0 0
        %461 = vmatpush1.bf16.msra.mxu0 %v439
        %462 = vmatprep.subr.bf16.mxu0 0
        %463 = vmatpush1.bf16.msra.mxu0 %v440
        %464 = vmatprep.subr.bf16.mxu0 0
        %465 = vmatpush1.bf16.msra.mxu0 %v441
        %466 = vmatprep.subr.bf16.mxu0 0
        %467 = vmatpush1.bf16.msra.mxu0 0
        %468 = vmatprep.subr.bf16.mxu0 0
        %469 = vmatpush1.bf16.msra.mxu0 0
        %470 = vmatprep.subr.bf16.mxu0 0
        %471 = vmatpush1.bf16.msra.mxu0 0
        %472 = vmatprep.subr.bf16.mxu0 0
        %473 = vmatpush1.bf16.msra.mxu0 0
        %474 = vmatprep.subr.bf16.mxu0 0
        %475 = vmatpush1.bf16.msra.mxu0 0
        %476 = vmatprep.subr.bf16.mxu0 0
        %477 = vmatpush1.bf16.msra.mxu0 0
        %478 = vmatprep.subr.bf16.mxu0 0
        %479 = vmatpush1.bf16.msra.mxu0 0
        %480 = vmatprep.subr.bf16.mxu0 0
        %481 = vmatpush1.bf16.msra.mxu0 0
        %482 = vmatprep.mubr.bf16.mxu0 0
        %483 = vmatmul.mubr.bf16.gmra.mrb[0].mxu0 %v385
        %v484 = vpop.f32.mrb[0].mxu0
        %v485 = vadd.f32 0.0, %v484
        %v486 = vpop.f32.mrb[0].mxu0
        %v487 = vpop.f32.mrb[0].mxu0
        %v488 = vpop.f32.mrb[0].mxu0
        %489 = vdwg.mxu0
        %v490 = vld [vmem:[%s4] sm:$0x1]
        %v492 = vlaneseq
        %v493 = vshrl.u32 %v492, 7
        %v494 = vsub.s32 0, %v493
        %v495 = vrot.slane %v490, %v494
        %v497 = vmul.f32 %v485, %v495
        %v498 = vld [vmem:[%s5] sm:$0x1]
        %v500 = vlaneseq
        %v501 = vshrl.u32 %v500, 7
        %v502 = vsub.s32 0, %v501
        %v503 = vrot.slane %v498, %v502
        %v505 = vadd.f32 %v497, %v503
        %vm506 = vcmp.ge.f32.partialorder %v505, 0.0
        %v507 = vstv %s382
        %v508 = vmul.f32 %v507, %v505
        %v509 = vsel %vm506, %v505, %v508
        %v510 = vpack.c.bf16 %v509, %v509
        %v511 = vld [vmem:[#allocation8] sm:$0xf]
        %v512 = vld [vmem:[#allocation8 + $0x4] sm:$0xf]
        %v513 = vld [vmem:[#allocation8 + $0x8] sm:$0xf]
        %v514 = vld [vmem:[#allocation8 + $0xc] sm:$0xf]
        %v515 = vld [vmem:[#allocation8 + $0x10] sm:$0xf]
        %v516 = vld [vmem:[#allocation8 + $0x14] sm:$0xf]
        %v517 = vld [vmem:[#allocation8 + $0x18] sm:$0xf]
        %v518 = vld [vmem:[#allocation8 + $0x1c] sm:$0xf]
        %v519 = vld [vmem:[#allocation8 + $0x20] sm:$0xf]
        %v520 = vld [vmem:[#allocation8 + $0x24] sm:$0xf]
        %v521 = vld [vmem:[#allocation8 + $0x28] sm:$0xf]
        %v522 = vld [vmem:[#allocation8 + $0x2c] sm:$0xf]
        %v523 = vld [vmem:[#allocation8 + $0x30] sm:$0xf]
        %v524 = vld [vmem:[#allocation8 + $0x34] sm:$0xf]
        %v525 = vld [vmem:[#allocation8 + $0x38] sm:$0xf]
        %v526 = vld [vmem:[#allocation8 + $0x3c] sm:$0xf]
        %v543 = vunpack.c.l.b16 %v511
        %v544 = vunpack.c.l.b16 %v512
        %v545 = vunpack.c.l.b16 %v513
        %v546 = vunpack.c.l.b16 %v514
        %v547 = vunpack.c.l.b16 %v515
        %v548 = vunpack.c.l.b16 %v516
        %v549 = vunpack.c.l.b16 %v517
        %v550 = vunpack.c.l.b16 %v518
        %v551 = vunpack.c.l.b16 %v519
        %v552 = vunpack.c.l.b16 %v520
        %v553 = vunpack.c.l.b16 %v521
        %v554 = vunpack.c.l.b16 %v522
        %v555 = vunpack.c.l.b16 %v523
        %v556 = vunpack.c.l.b16 %v524
        %v557 = vunpack.c.l.b16 %v525
        %v558 = vunpack.c.l.b16 %v526
        %v559 = vpack.c.b16 %v544, %v543
        %v560 = vpack.c.b16 %v546, %v545
        %v561 = vpack.c.b16 %v548, %v547
        %v562 = vpack.c.b16 %v550, %v549
        %v563 = vpack.c.b16 %v552, %v551
        %v564 = vpack.c.b16 %v554, %v553
        %v565 = vpack.c.b16 %v556, %v555
        %v566 = vpack.c.b16 %v558, %v557
        %575 = vmatprep.subr.bf16.mxu0 0
        %576 = vmatpush1.bf16.msra.mxu0 %v559
        %577 = vmatprep.subr.bf16.mxu0 0
        %578 = vmatpush1.bf16.msra.mxu0 %v560
        %579 = vmatprep.subr.bf16.mxu0 0
        %580 = vmatpush1.bf16.msra.mxu0 %v561
        %581 = vmatprep.subr.bf16.mxu0 0
        %582 = vmatpush1.bf16.msra.mxu0 %v562
        %583 = vmatprep.subr.bf16.mxu0 0
        %584 = vmatpush1.bf16.msra.mxu0 %v563
        %585 = vmatprep.subr.bf16.mxu0 0
        %586 = vmatpush1.bf16.msra.mxu0 %v564
        %587 = vmatprep.subr.bf16.mxu0 0
        %588 = vmatpush1.bf16.msra.mxu0 %v565
        %589 = vmatprep.subr.bf16.mxu0 0
        %590 = vmatpush1.bf16.msra.mxu0 %v566
        %591 = vmatprep.subr.bf16.mxu0 0
        %592 = vmatpush1.bf16.msra.mxu0 0
        %593 = vmatprep.subr.bf16.mxu0 0
        %594 = vmatpush1.bf16.msra.mxu0 0
        %595 = vmatprep.subr.bf16.mxu0 0
        %596 = vmatpush1.bf16.msra.mxu0 0
        %597 = vmatprep.subr.bf16.mxu0 0
        %598 = vmatpush1.bf16.msra.mxu0 0
        %599 = vmatprep.subr.bf16.mxu0 0
        %600 = vmatpush1.bf16.msra.mxu0 0
        %601 = vmatprep.subr.bf16.mxu0 0
        %602 = vmatpush1.bf16.msra.mxu0 0
        %603 = vmatprep.subr.bf16.mxu0 0
        %604 = vmatpush1.bf16.msra.mxu0 0
        %605 = vmatprep.subr.bf16.mxu0 0
        %606 = vmatpush1.bf16.msra.mxu0 0
        %607 = vmatprep.mubr.bf16.mxu0 0
        %608 = vmatmul.mubr.bf16.gmra.mrb[0].mxu0 %v510
        %v609 = vpop.f32.mrb[0].mxu0
        %v610 = vadd.f32 0.0, %v609
        %v611 = vpop.f32.mrb[0].mxu0
        %v612 = vpop.f32.mrb[0].mxu0
        %v613 = vpop.f32.mrb[0].mxu0
        %614 = vdwg.mxu0
        %v615 = vld [vmem:[%s380] sm:$0xf]
        %v616 = vunpack.c.l.bf16 %v615
        %vm617 = vcmask 64512
        %v618 = vsel %vm617, %v616, 0.0
        %619 = vadd.xlane.f32.xlu0 %v618
        %v620 = vpop.xlane.xlu0 %619
        %vm621 = vcmp.gt.f32.partialorder %v620, 0.0
        %v622 = vrsqrt.pop %v620
        %v623 = vsel %vm621, %v622, 0.0
        %v624 = vmul.f32 %v623, %v610
        %v625 = vpack.c.bf16 %v624, %v624
        %v627 = vsel %vm617, %v615, 0
        %vm629 = vcmask 1043456
        %v631 = vsel %vm629, %v625, 0
        %633 = vmatprep.subr.bf16.mxu0 0
        %634 = vmatpush1.bf16.msra.mxu0 %v631
        %635 = vmatprep.subr.bf16.mxu0 0
        %636 = vmatpush1.bf16.msra.mxu0 0
        %637 = vmatprep.subr.bf16.mxu0 0
        %638 = vmatpush1.bf16.msra.mxu0 0
        %639 = vmatprep.subr.bf16.mxu0 0
        %640 = vmatpush1.bf16.msra.mxu0 0
        %641 = vmatprep.subr.bf16.mxu0 0
        %642 = vmatpush1.bf16.msra.mxu0 0
        %643 = vmatprep.subr.bf16.mxu0 0
        %644 = vmatpush1.bf16.msra.mxu0 0
        %645 = vmatprep.subr.bf16.mxu0 0
        %646 = vmatpush1.bf16.msra.mxu0 0
        %647 = vmatprep.subr.bf16.mxu0 0
        %648 = vmatpush1.bf16.msra.mxu0 0
        %649 = vmatprep.subr.bf16.mxu0 0
        %650 = vmatpush1.bf16.msra.mxu0 0
        %651 = vmatprep.subr.bf16.mxu0 0
        %652 = vmatpush1.bf16.msra.mxu0 0
        %653 = vmatprep.subr.bf16.mxu0 0
        %654 = vmatpush1.bf16.msra.mxu0 0
        %655 = vmatprep.subr.bf16.mxu0 0
        %656 = vmatpush1.bf16.msra.mxu0 0
        %657 = vmatprep.subr.bf16.mxu0 0
        %658 = vmatpush1.bf16.msra.mxu0 0
        %659 = vmatprep.subr.bf16.mxu0 0
        %660 = vmatpush1.bf16.msra.mxu0 0
        %661 = vmatprep.subr.bf16.mxu0 0
        %662 = vmatpush1.bf16.msra.mxu0 0
        %663 = vmatprep.subr.bf16.mxu0 0
        %664 = vmatpush1.bf16.msra.mxu0 0
        %665 = vmatprep.mubr.bf16.mxu0 0
        %666 = vmatmul.mubr.bf16.gmra.mrb[0].mxu0 %v627
        %v667 = vpop.f32.mrb[0].mxu0
        %v668 = vadd.f32 0.0, %v667
        %v669 = vpop.f32.mrb[0].mxu0
        %v670 = vpop.f32.mrb[0].mxu0
        %v671 = vpop.f32.mrb[0].mxu0
        %672 = vdwg.mxu0
        %v673 = vmul.f32 %v623, %v668
        %v674 = vld [vmem:[%s6] sm:$0x1]
        %v676 = vlaneseq
        %v677 = vshrl.u32 %v676, 7
        %v678 = vsub.s32 0, %v677
        %v679 = vrot.slane %v674, %v678
        %v681 = vadd.f32 %v673, %v679
        %vm682 = vcmp.ge.f32.partialorder %v681, 0.0
        %v683 = vstv %s383
        %v684 = vmul.f32 %v683, %v681
        %v685 = vsel %vm682, %v681, %v684
        %v686 = vmul.f32 %v685, %v685
        %687 = vadd.xlane.f32.xlu0 %v686
        %v688 = vpop.xlane.xlu0 %687
        %v689 = vmax.f32 %v688, 1e-24
        %v690 = vrsqrt.pop %v689
        %v691 = vmul.f32 %v685, %v690
        %v692 = vadd.f32 %v691, %v384
        %693 = vst [vmem:[%s376] sm:$0xff] %v692
        %s694 = sand.u32 %s213, 1
        %s695 = scalar_lea.sflag [#allocation4], %s694
        %s696 = sand.u32 %s213, 1
        %s697 = smul.addr %s696, 8
        %s698 = scalar_lea.vmem [#allocation10], %s697
        // Predicated region
        $region69: #{tpu_custom_call.1} parent=51 // pred_check
          %p699 = pneg %p223
        $region70: #{tpu_custom_call.1} parent=51 // pred_check_branch
          %701 = sbr.rel (%p699) target = $region72
        $region71: #{tpu_custom_call.1} parent=51 // pred_region
          %s703 = ssub.s32 128, 128
          %704 = vsyncadd %s695, %s703
          %s705 = smul.addr %s27, 128
          %s706 = scalar_lea.hbm %s8, %s705
          %s708 = sshll.u32 %s698, 4
          %s709 = int_to_ptr.vmem [resolvable:$true] %s708
          %711 = dma.vmem_to_hbm [thread:$0]  %s709, 128, %s706, %s695
        $region72: #{tpu_custom_call.1} parent=51 // pred_fallthru
          _
      $region52: #{tpu_custom_call.1} parent=5 // pred_fallthru
        _
      %p712 = scmp.le.s32.totalorder 2, %s22
      // Predicated region
      $region73: #{tpu_custom_call.1} parent=5 // pred_check
        %p713 = pneg %p712
      $region74: #{tpu_custom_call.1} parent=5 // pred_check_branch
        %715 = sbr.rel (%p713) target = $region76
      $region75: #{tpu_custom_call.1} parent=5 // pred_region
        %s716 = ssub.s32 %s22, 2
        // Predicated region
        $region77: #{tpu_custom_call.1} parent=75 // pred_check
          %p717 = pneg %p229
        $region78: #{tpu_custom_call.1} parent=75 // pred_check_branch
          %719 = sbr.rel (%p717) target = $region80
        $region79: #{tpu_custom_call.1} parent=75 // pred_region
          %s720 = sand.u32 %s214, 1
          %s721 = scalar_lea.sflag [#allocation4], %s720
          %s722 = sand.u32 %s214, 1
          %s723 = smul.addr %s722, 8
          %s724 = scalar_lea.vmem [#allocation10], %s723
          %725 = dma.done %s721, 128
        $region80: #{tpu_custom_call.1} parent=75 // pred_fallthru
          _
      $region76: #{tpu_custom_call.1} parent=5 // pred_fallthru
        _
    $region6: #{tpu_custom_call.1} parent=1 // loop_footer
      %s26 = sadd.s32 1, %s22
    $region7: #{tpu_custom_call.1} parent=1 // loop_footer_branch
      %21 = sbr.rel target = $region3
    $region8: #{tpu_custom_call.1} parent=1 // loop_exit
      _
    %726 = vsyncpa [#allocation3], 1
    %s727 = scalar_lea.sflag [#allocation3], 1
    %728 = vsyncpa %s727, 1
    %729 = vsyncpa [#allocation7], 1
    %730 = vsyncpa [#allocation4], 1
    %s731 = scalar_lea.sflag [#allocation4], 1
    %732 = vsyncpa %s731, 1
    %733 = vsyncpa [#allocation5], 1
    %s734 = scalar_lea.sflag [#allocation5], 1
    %735 = vsyncpa %s734, 1

</llo_original>
